<compile_context>
chip_gen: v7x
topology: tpu7x:2x2x1
jax: 0.10.0
libtpu: 0.0.40
codegen_flags: <defaults>
</compile_context>

<pallas_src>
import functools

import jax
import jax.numpy as jnp
from jax.experimental import pallas as pl
from jax.experimental.pallas import tpu as pltpu


def _factorized_reduce_kernel(x_ref, ge_ref, go_ref, w1_ref, w2_ref, b1_ref, b2_ref,
                              o_ref, *, c_half):
    """One batch item, one row-tile.

    x_ref:  (C_in, S)      S = 2*t_ho*W contiguous input rows, flattened (row, col)
    ge_ref: (S, P)         0/1 selection matrix -> even-row / even-col pixels
    go_ref: (S, P)         0/1 selection matrix -> odd-row  / odd-col  pixels
    w1_ref: (C_half, C_in) conv_1 weight with BN scale folded in
    w2_ref: (C_half, C_in) conv_2 weight with BN scale folded in
    b1_ref: (C_half, 1)    folded BN bias (top half channels), f32
    b2_ref: (C_half, 1)    folded BN bias (bottom half channels), f32
    o_ref:  (C_out, P)     P = t_ho*Wo output pixels, NCHW-flat order
    """
    x = jnp.maximum(x_ref[...], 0)                       # ReLU, native dtype (VPU)
    # Stride-2 spatial gather done as exact 0/1 matmuls on the MXU.
    xe = jnp.dot(x, ge_ref[...])                         # (C_in, P) even rows/cols
    xo = jnp.dot(x, go_ref[...])                         # (C_in, P) odd  rows/cols
    # The two 1x1 convs (BN scale pre-folded), f32 accumulation, + folded BN bias.
    top = jnp.dot(w1_ref[...], xe, preferred_element_type=jnp.float32) + b1_ref[...]
    bot = jnp.dot(w2_ref[...], xo, preferred_element_type=jnp.float32) + b2_ref[...]
    o_ref[0:c_half, :] = top.astype(o_ref.dtype)
    o_ref[c_half:2 * c_half, :] = bot.astype(o_ref.dtype)


def _select_row_tile(n_batch, c_in, c_out, ho, wo, w_full, x_bytes, cd_bytes):
    """Pick the output-row tile t_ho (a divisor of Ho).

    Constraints (in priority order): lane-legal blocks, fit a conservative VMEM
    budget, keep the selection-matmul flops modest, and give >= 2 grid steps.
    """
    def lane_ok(t):
        # Output block lane width t*Wo must be a multiple of 128, or a full image.
        return (t * wo) % 128 == 0 or t == ho

    def vmem_bytes(t):
        s, p = 2 * t * w_full, t * wo
        return (2 * c_in * s * x_bytes          # double-buffered input tile
                + 2 * c_out * p * x_bytes       # double-buffered output tile
                + 2 * s * p * cd_bytes          # G_even + G_odd
                + c_out * c_in * cd_bytes       # folded conv weights
                + (2 * c_in + c_out) * p * 4)   # f32 temporaries (xe, xo, top, bot)

    p_cap = 512 if cd_bytes <= 2 else 256       # keep MXU-gather flops << HBM roofline
    budget = 10 * (1 << 20)                     # safe vs. v5e's 16 MiB scoped default

    cands = [t for t in range(ho, 0, -1) if ho % t == 0 and lane_ok(t)]
    fit = [t for t in cands if vmem_bytes(t) <= budget]
    pool = fit if fit else [min(cands)]         # smallest footprint if nothing fits

    chosen = None
    for t in pool:                              # descending: prefer the largest tile
        if t * wo <= p_cap and n_batch * (ho // t) >= 2:
            chosen = t
            break
    if chosen is None:
        for t in pool:
            if t * wo <= p_cap:
                chosen = t
                break
    if chosen is None:
        chosen = pool[-1]
    return chosen, vmem_bytes(chosen)


def factorized_reduce_forward(x, w1, w2, gamma, beta, running_mean, running_var,
                              eps=1e-5):
    """Pallas equivalent of FactorizedReduce(C_in, C_out).forward(x).

    x: (N, C_in, H, W) with H, W even.  w1, w2: (C_out//2, C_in, 1, 1).
    gamma/beta/running_mean/running_var: (C_out,).  Returns (N, C_out, H//2, W//2).
    """
    n, c_in, h, w = x.shape
    assert h % 2 == 0 and w % 2 == 0, "FactorizedReduce requires even H and W"
    c_half = w1.shape[0]
    assert w1.shape == (c_half, c_in, 1, 1) and w2.shape == (c_half, c_in, 1, 1)
    c_out = 2 * c_half
    ho, wo = h // 2, w // 2

    f32 = jnp.float32
    cdtype = x.dtype                     # keep bf16 on the bf16 MXU path, f32 stays f32
    x_bytes = jnp.dtype(x.dtype).itemsize
    cd_bytes = jnp.dtype(cdtype).itemsize

    t_ho, vmem_est = _select_row_tile(n, c_in, c_out, ho, wo, w, x_bytes, cd_bytes)
    s_tile = 2 * t_ho * w                # input pixels per step (flattened rows)
    p_tile = t_ho * wo                   # output pixels per step
    grid = (n, ho // t_ho)

    # ---- wrapper-side prep: NO data movement of x (free view) ------------------
    x_flat = x.reshape(n, c_in, h * w)

    # Fold inference-mode BN into the conv weights (scale) and a bias.
    inv_std = jax.lax.rsqrt(running_var.astype(f32) + eps)
    scale = gamma.astype(f32) * inv_std
    bias = beta.astype(f32) - running_mean.astype(f32) * scale
    w1s = (w1.reshape(c_half, c_in).astype(f32) * scale[:c_half, None]).astype(cdtype)
    w2s = (w2.reshape(c_half, c_in).astype(f32) * scale[c_half:, None]).astype(cdtype)
    b1 = bias[:c_half].reshape(c_half, 1)
    b2 = bias[c_half:].reshape(c_half, 1)

    # 0/1 selection matrices performing the stride-2 gather on the MXU (exact).
    p_idx = jnp.arange(p_tile)
    r_out = p_idx // wo
    col = p_idx % wo
    s_even = 2 * r_out * w + 2 * col                    # offset (0, 0) subsample
    s_odd = (2 * r_out + 1) * w + 2 * col + 1           # offset (1, 1) subsample
    s_idx = jnp.arange(s_tile)[:, None]
    g_even = (s_idx == s_even[None, :]).astype(cdtype)  # (S, P)
    g_odd = (s_idx == s_odd[None, :]).astype(cdtype)    # (S, P)

    kernel = functools.partial(_factorized_reduce_kernel, c_half=c_half)

    out_flat = pl.pallas_call(
        kernel,
        out_shape=jax.ShapeDtypeStruct((n, c_out, ho * wo), x.dtype),
        grid=grid,
        in_specs=[
            pl.BlockSpec((None, c_in, s_tile), lambda i, r: (i, 0, r)),  # x rows
            pl.BlockSpec((s_tile, p_tile), lambda i, r: (0, 0)),         # G_even
            pl.BlockSpec((s_tile, p_tile), lambda i, r: (0, 0)),         # G_odd
            pl.BlockSpec((c_half, c_in), lambda i, r: (0, 0)),           # W1*scale
            pl.BlockSpec((c_half, c_in), lambda i, r: (0, 0)),           # W2*scale
            pl.BlockSpec((c_half, 1), lambda i, r: (0, 0)),              # bias top
            pl.BlockSpec((c_half, 1), lambda i, r: (0, 0)),              # bias bot
        ],
        out_specs=pl.BlockSpec((None, c_out, p_tile), lambda i, r: (i, 0, r)),
        compiler_params=pltpu.CompilerParams(
            dimension_semantics=("parallel", "parallel"),
            vmem_limit_bytes=int(min(64 << 20, max(32 << 20, 2 * vmem_est))),
        ),
    )(x_flat, g_even, g_odd, w1s, w2s, b1, b2)

    # (N, C_out, Ho*Wo) -> (N, C_out, Ho, Wo): free reshape, no transpose needed.
    return out_flat.reshape(n, c_out, ho, wo)


def factorized_reduce_reference(x, w1, w2, gamma, beta, running_mean, running_var,
                                eps=1e-5):
    """Pure-JAX reference (inference-mode BN), for correctness checking."""
    xr = jax.nn.relu(x)
    x1 = xr[:, :, 0::2, 0::2]
    x2 = xr[:, :, 1::2, 1::2]
    c_half, c_in = w1.shape[0], w1.shape[1]
    w1m = w1.reshape(c_half, c_in)
    w2m = w2.reshape(c_half, c_in)
    hi = jax.lax.Precision.HIGHEST
    y1 = jnp.einsum("oc,nchw->nohw", w1m, x1, precision=hi)
    y2 = jnp.einsum("oc,nchw->nohw", w2m, x2, precision=hi)
    y = jnp.concatenate([y1, y2], axis=1)
    inv_std = 1.0 / jnp.sqrt(running_var + eps)
    scale = gamma * inv_std
    bias = beta - running_mean * scale
    return y * scale[None, :, None, None] + bias[None, :, None, None]


if __name__ == "__main__":
    key = jax.random.PRNGKey(0)
    N, C_in, H, W = 2, 4, 16, 16
    C_out = 8

    k1, k2, k3, k4, k5, k6, k7 = jax.random.split(key, 7)
    x = jax.random.normal(k1, (N, C_in, H, W), dtype=jnp.float32)
    w1 = jax.random.normal(k2, (C_out // 2, C_in, 1, 1), dtype=jnp.float32) * 0.3
    w2 = jax.random.normal(k3, (C_out // 2, C_in, 1, 1), dtype=jnp.float32) * 0.3
    gamma = 1.0 + 0.1 * jax.random.normal(k4, (C_out,), dtype=jnp.float32)
    beta = 0.1 * jax.random.normal(k5, (C_out,), dtype=jnp.float32)
    running_mean = 0.1 * jax.random.normal(k6, (C_out,), dtype=jnp.float32)
    running_var = jax.random.uniform(k7, (C_out,), dtype=jnp.float32,
                                     minval=0.5, maxval=1.5)

    out = jax.jit(factorized_reduce_forward)(
        x, w1, w2, gamma, beta, running_mean, running_var)
    out = jax.block_until_ready(out)

    ref = factorized_reduce_reference(x, w1, w2, gamma, beta, running_mean,
                                      running_var)

    assert out.shape == (N, C_out, H // 2, W // 2), (out.shape,)
    assert out.dtype == x.dtype
    max_err = float(jnp.max(jnp.abs(out - ref)))
    assert jnp.allclose(out, ref, atol=1e-4, rtol=1e-4), max_err

    print("KERNEL_OK")
</pallas_src>

<mosaic_0001>
module attributes {stable_mosaic.version = 11 : i64} {
  func.func @_factorized_reduce_kernel(%arg0: i32, %arg1: i32, %arg2: memref<1x4x256xf32, #tpu.memory_space<vmem>>, %arg3: memref<256x64xf32, #tpu.memory_space<vmem>>, %arg4: memref<256x64xf32, #tpu.memory_space<vmem>>, %arg5: memref<4x4xf32, #tpu.memory_space<vmem>>, %arg6: memref<4x4xf32, #tpu.memory_space<vmem>>, %arg7: memref<4x1xf32, #tpu.memory_space<vmem>>, %arg8: memref<4x1xf32, #tpu.memory_space<vmem>>, %arg9: memref<1x8x64xf32, #tpu.memory_space<vmem>>) attributes {dimension_semantics = [#tpu.dimension_semantics<parallel>, #tpu.dimension_semantics<parallel>], iteration_bounds = array<i64: 2, 1>, scalar_prefetch = 0 : i64, scratch_operands = 0 : i64, tpu.core_type = #tpu.core_type<tc>, window_params = [{transform_indices = @transform_0, window_bounds = array<i64: 1, 4, 256>}, {pipeline_mode = #tpu.pipeline_mode<synchronous>, transform_indices = @transform_1, window_bounds = array<i64: 256, 64>}, {pipeline_mode = #tpu.pipeline_mode<synchronous>, transform_indices = @transform_2, window_bounds = array<i64: 256, 64>}, {pipeline_mode = #tpu.pipeline_mode<synchronous>, transform_indices = @transform_3, window_bounds = array<i64: 4, 4>}, {pipeline_mode = #tpu.pipeline_mode<synchronous>, transform_indices = @transform_4, window_bounds = array<i64: 4, 4>}, {pipeline_mode = #tpu.pipeline_mode<synchronous>, transform_indices = @transform_5, window_bounds = array<i64: 4, 1>}, {pipeline_mode = #tpu.pipeline_mode<synchronous>, transform_indices = @transform_6, window_bounds = array<i64: 4, 1>}, {transform_indices = @transform_7, window_bounds = array<i64: 1, 8, 64>}]} {
    %c0 = arith.constant 0 : index
    %c0_0 = arith.constant 0 : index
    %c0_1 = arith.constant 0 : index
    %0 = vector.load %arg2[%c0, %c0_0, %c0_1] : memref<1x4x256xf32, #tpu.memory_space<vmem>>, vector<1x4x256xf32>
    %1 = vector.shape_cast %0 : vector<1x4x256xf32> to vector<4x256xf32>
    %cst = arith.constant 0.000000e+00 : f32
    %2 = vector.broadcast %cst : f32 to vector<4x256xf32>
    %3 = arith.maximumf %1, %2 : vector<4x256xf32>
    %c0_2 = arith.constant 0 : index
    %c0_3 = arith.constant 0 : index
    %4 = vector.load %arg3[%c0_2, %c0_3] : memref<256x64xf32, #tpu.memory_space<vmem>>, vector<256x64xf32>
    %cst_4 = arith.constant dense<0.000000e+00> : vector<4x64xf32>
    %5 = tpu.matmul %3, %4, %cst_4 {dimension_numbers = #tpu.dot_dimension_numbers<[1], [0], [0], [1], [0, 0, 1, 1], [], []>} : vector<4x256xf32>, vector<256x64xf32>, vector<4x64xf32> -> vector<4x64xf32>
    %c0_5 = arith.constant 0 : index
    %c0_6 = arith.constant 0 : index
    %6 = vector.load %arg4[%c0_5, %c0_6] : memref<256x64xf32, #tpu.memory_space<vmem>>, vector<256x64xf32>
    %cst_7 = arith.constant dense<0.000000e+00> : vector<4x64xf32>
    %7 = tpu.matmul %3, %6, %cst_7 {dimension_numbers = #tpu.dot_dimension_numbers<[1], [0], [0], [1], [0, 0, 1, 1], [], []>} : vector<4x256xf32>, vector<256x64xf32>, vector<4x64xf32> -> vector<4x64xf32>
    %c0_8 = arith.constant 0 : index
    %c0_9 = arith.constant 0 : index
    %8 = vector.load %arg5[%c0_8, %c0_9] : memref<4x4xf32, #tpu.memory_space<vmem>>, vector<4x4xf32>
    %cst_10 = arith.constant dense<0.000000e+00> : vector<4x64xf32>
    %9 = tpu.matmul %8, %5, %cst_10 {dimension_numbers = #tpu.dot_dimension_numbers<[1], [0], [0], [1], [0, 0, 1, 1], [], []>} : vector<4x4xf32>, vector<4x64xf32>, vector<4x64xf32> -> vector<4x64xf32>
    %c0_11 = arith.constant 0 : index
    %c0_12 = arith.constant 0 : index
    %10 = vector.load %arg7[%c0_11, %c0_12] : memref<4x1xf32, #tpu.memory_space<vmem>>, vector<4x1xf32>
    %11 = vector.broadcast %10 : vector<4x1xf32> to vector<4x64xf32>
    %12 = arith.addf %9, %11 : vector<4x64xf32>
    %c0_13 = arith.constant 0 : index
    %c0_14 = arith.constant 0 : index
    %13 = vector.load %arg6[%c0_13, %c0_14] : memref<4x4xf32, #tpu.memory_space<vmem>>, vector<4x4xf32>
    %cst_15 = arith.constant dense<0.000000e+00> : vector<4x64xf32>
    %14 = tpu.matmul %13, %7, %cst_15 {dimension_numbers = #tpu.dot_dimension_numbers<[1], [0], [0], [1], [0, 0, 1, 1], [], []>} : vector<4x4xf32>, vector<4x64xf32>, vector<4x64xf32> -> vector<4x64xf32>
    %c0_16 = arith.constant 0 : index
    %c0_17 = arith.constant 0 : index
    %15 = vector.load %arg8[%c0_16, %c0_17] : memref<4x1xf32, #tpu.memory_space<vmem>>, vector<4x1xf32>
    %16 = vector.broadcast %15 : vector<4x1xf32> to vector<4x64xf32>
    %17 = arith.addf %14, %16 : vector<4x64xf32>
    %c0_18 = arith.constant 0 : index
    %c0_19 = arith.constant 0 : index
    %c0_20 = arith.constant 0 : index
    %18 = vector.load %arg9[%c0_18, %c0_19, %c0_20] : memref<1x8x64xf32, #tpu.memory_space<vmem>>, vector<1x4x64xf32>
    %19 = vector.shape_cast %18 : vector<1x4x64xf32> to vector<4x64xf32>
    %20 = vector.shape_cast %12 : vector<4x64xf32> to vector<1x4x64xf32>
    tpu.vector_store %arg9[%c0_18, %c0_19, %c0_20], %20 {strides = array<i32>} : memref<1x8x64xf32, #tpu.memory_space<vmem>>, vector<1x4x64xf32>,
    %c0_21 = arith.constant 0 : index
    %c4 = arith.constant 4 : index
    %c0_22 = arith.constant 0 : index
    %21 = vector.load %arg9[%c0_21, %c4, %c0_22] : memref<1x8x64xf32, #tpu.memory_space<vmem>>, vector<1x4x64xf32>
    %22 = vector.shape_cast %21 : vector<1x4x64xf32> to vector<4x64xf32>
    %23 = vector.shape_cast %17 : vector<4x64xf32> to vector<1x4x64xf32>
    tpu.vector_store %arg9[%c0_21, %c4, %c0_22], %23 {strides = array<i32>} : memref<1x8x64xf32, #tpu.memory_space<vmem>>, vector<1x4x64xf32>,
    return
  }
  func.func @transform_0(%arg0: i32, %arg1: i32) -> (i32, i32, i32) {
    %c0_i32 = arith.constant 0 : i32
    %c0_i32_0 = arith.constant 0 : i32
    return %arg0, %c0_i32, %arg1 : i32, i32, i32
  }
  func.func @transform_1(%arg0: i32, %arg1: i32) -> (i32, i32) {
    %c0_i32 = arith.constant 0 : i32
    %c0_i32_0 = arith.constant 0 : i32
    %c0_i32_1 = arith.constant 0 : i32
    return %c0_i32, %c0_i32_0 : i32, i32
  }
  func.func @transform_2(%arg0: i32, %arg1: i32) -> (i32, i32) {
    %c0_i32 = arith.constant 0 : i32
    %c0_i32_0 = arith.constant 0 : i32
    %c0_i32_1 = arith.constant 0 : i32
    return %c0_i32, %c0_i32_0 : i32, i32
  }
  func.func @transform_3(%arg0: i32, %arg1: i32) -> (i32, i32) {
    %c0_i32 = arith.constant 0 : i32
    %c0_i32_0 = arith.constant 0 : i32
    %c0_i32_1 = arith.constant 0 : i32
    return %c0_i32, %c0_i32_0 : i32, i32
  }
  func.func @transform_4(%arg0: i32, %arg1: i32) -> (i32, i32) {
    %c0_i32 = arith.constant 0 : i32
    %c0_i32_0 = arith.constant 0 : i32
    %c0_i32_1 = arith.constant 0 : i32
    return %c0_i32, %c0_i32_0 : i32, i32
  }
  func.func @transform_5(%arg0: i32, %arg1: i32) -> (i32, i32) {
    %c0_i32 = arith.constant 0 : i32
    %c0_i32_0 = arith.constant 0 : i32
    %c0_i32_1 = arith.constant 0 : i32
    return %c0_i32, %c0_i32_0 : i32, i32
  }
  func.func @transform_6(%arg0: i32, %arg1: i32) -> (i32, i32) {
    %c0_i32 = arith.constant 0 : i32
    %c0_i32_0 = arith.constant 0 : i32
    %c0_i32_1 = arith.constant 0 : i32
    return %c0_i32, %c0_i32_0 : i32, i32
  }
  func.func @transform_7(%arg0: i32, %arg1: i32) -> (i32, i32, i32) {
    %c0_i32 = arith.constant 0 : i32
    %c0_i32_0 = arith.constant 0 : i32
    return %arg0, %c0_i32, %arg1 : i32, i32, i32
  }
}

</mosaic_0001>

<llo_original>
// kernel: factorized_reduce_forward.1
$region0: #{factorized_reduce_forward.1}
  #allocation0 [shape = 'u32[]', space=smem, size = 0x4, offset = 0x4, fixed_abs, tag = 'smem constant byte address 0x4 - core index']
  #allocation1 [shape = 'u32[144,128]{1,0:T(1,128)}', space=vmem, size = 0x12000, scoped, tag = 'internal scratch']
  %s0 = inlined_call_operand.vmem [shape: f32[2,4,256], index: 0, kind: input, shape index: {}]
  %s1 = inlined_call_operand.vmem [shape: f32[256,64], index: 1, kind: input, shape index: {}]
  %s2 = inlined_call_operand.vmem [shape: f32[256,64], index: 2, kind: input, shape index: {}]
  %s3 = inlined_call_operand.vmem [shape: f32[4,4], index: 3, kind: input, shape index: {}]
  %s4 = inlined_call_operand.vmem [shape: f32[4,4], index: 4, kind: input, shape index: {}]
  %s5 = inlined_call_operand.vmem [shape: f32[4,1], index: 5, kind: input, shape index: {}]
  %s6 = inlined_call_operand.vmem [shape: f32[4,1], index: 6, kind: input, shape index: {}]
  %s7 = inlined_call_operand.vmem [shape: f32[2,8,64], index: 7, kind: output, shape index: {}]
  %s8 = sld [smem:[#allocation0]]
  $region61: #{factorized_reduce_forward.1} parent=0
    _
  %s10 = ssub.s32 1, %s8
  %s11 = scalar_select 0, %s10, %s8
  loop: start=0, step=1, limit=4
  $region2: #{factorized_reduce_forward.1} parent=0 // loop_pre_header
    _
  $region3: #{factorized_reduce_forward.1} parent=0 // loop_header
    %s13 = sphi 0, %s17
    %p14 = scmp.ge.s32.totalorder %s13, 4
    %s20 = sphi 0, %s32
    %s21 = sphi 0, %s28
    %s22 = sphi 0, %s20
    %s23 = sphi 0, %s21
    %s24 = sphi 0, %s22
    %s25 = sphi 0, %s23
    %s37 = sphi 0, %s39
    %s40 = sphi 0, %s37
    %s41 = sphi 0, %s40
    %s57 = sphi 0, %s41
    %s61 = sphi 0, %s61
    %s63 = sphi 0, %s61
    %s64 = sphi 0, %s63
    %s78 = sphi 0, %s64
    %s82 = sphi 0, %s82
    %s84 = sphi 0, %s82
    %s85 = sphi 0, %s84
    %s99 = sphi 0, %s85
    %s103 = sphi 0, %s103
    %s105 = sphi 0, %s103
    %s106 = sphi 0, %s105
    %s120 = sphi 0, %s106
    %s124 = sphi 0, %s124
    %s126 = sphi 0, %s124
    %s127 = sphi 0, %s126
    %s141 = sphi 0, %s127
    %s145 = sphi 0, %s145
    %s147 = sphi 0, %s145
    %s148 = sphi 0, %s147
    %s162 = sphi 0, %s148
    %s166 = sphi 0, %s166
    %s168 = sphi 0, %s166
    %s169 = sphi 0, %s168
    %s183 = sphi 0, %s169
    %s191 = sphi 0, %s193
    %s194 = sphi 0, %s191
    %s195 = sphi 0, %s194
    %s211 = sphi 0, %s195
  $region4: #{factorized_reduce_forward.1} parent=0 // loop_header_branch
    %16 = sbr.rel (%p14) target = $region8
  $region5: #{factorized_reduce_forward.1} parent=0 // loop_body
    %s18 = ssub.s32 %s13, 1
    %s19 = ssub.s32 %s13, 2
    %s26 = sadd.s32 1, %s21
    %p27 = scmp.ge.s32.totalorder %s26, 1
    %s28 = scalar_select %p27, 0, %s26
    %s29 = sadd.s32 1, %s20
    %s30 = scalar_select %p27, %s29, %s20
    %p31 = scmp.ge.s32.totalorder %s30, 2
    %s32 = scalar_select %p31, 0, %s30
    %s33 = ssub.s32 %s20, %s32
    %s34 = ssub.s32 %s21, %s28
    %s35 = sor.u32 %s33, %s34
    %p36 = scmp.eq.s32.totalorder %s35, 0
    %s38 = sadd.s32 %s37, 1
    %s39 = scalar_select %p36, %s37, %s38
    %p42 = pneg %p36
    %p43 = scmp.eq.s32.totalorder %s13, 1
    %p44 = por %p42, %p43
    %p45 = scmp.ne.s32.totalorder %s37, %s40
    %p46 = scmp.eq.s32.totalorder %s13, 0
    %p47 = por %p45, %p46
    %p48 = scmp.ne.s32.totalorder %s37, %s40
    %p49 = scmp.eq.s32.totalorder %s18, 1
    %p50 = por %p48, %p49
    %p51 = scmp.ne.s32.totalorder %s40, %s41
    %p52 = scmp.eq.s32.totalorder %s18, 0
    %p53 = por %p51, %p52
    %p54 = scmp.ne.s32.totalorder %s40, %s41
    %p55 = scmp.eq.s32.totalorder %s19, 1
    %p56 = por %p54, %p55
    %p58 = scmp.ne.s32.totalorder %s41, %s57
    %p59 = scmp.eq.s32.totalorder %s19, 0
    %p60 = por %p58, %p59
    %s62 = sadd.s32 %s61, 1
    %p65 = scmp.eq.s32.totalorder %s13, 1
    %p66 = scmp.ne.s32.totalorder %s61, %s63
    %p67 = scmp.eq.s32.totalorder %s13, 0
    %p68 = por %p66, %p67
    %p69 = scmp.ne.s32.totalorder %s61, %s63
    %p70 = scmp.eq.s32.totalorder %s18, 1
    %p71 = por %p69, %p70
    %p72 = scmp.ne.s32.totalorder %s63, %s64
    %p73 = scmp.eq.s32.totalorder %s18, 0
    %p74 = por %p72, %p73
    %p75 = scmp.ne.s32.totalorder %s63, %s64
    %p76 = scmp.eq.s32.totalorder %s19, 1
    %p77 = por %p75, %p76
    %p79 = scmp.ne.s32.totalorder %s64, %s78
    %p80 = scmp.eq.s32.totalorder %s19, 0
    %p81 = por %p79, %p80
    %s83 = sadd.s32 %s82, 1
    %p86 = scmp.eq.s32.totalorder %s13, 1
    %p87 = scmp.ne.s32.totalorder %s82, %s84
    %p88 = scmp.eq.s32.totalorder %s13, 0
    %p89 = por %p87, %p88
    %p90 = scmp.ne.s32.totalorder %s82, %s84
    %p91 = scmp.eq.s32.totalorder %s18, 1
    %p92 = por %p90, %p91
    %p93 = scmp.ne.s32.totalorder %s84, %s85
    %p94 = scmp.eq.s32.totalorder %s18, 0
    %p95 = por %p93, %p94
    %p96 = scmp.ne.s32.totalorder %s84, %s85
    %p97 = scmp.eq.s32.totalorder %s19, 1
    %p98 = por %p96, %p97
    %p100 = scmp.ne.s32.totalorder %s85, %s99
    %p101 = scmp.eq.s32.totalorder %s19, 0
    %p102 = por %p100, %p101
    %s104 = sadd.s32 %s103, 1
    %p107 = scmp.eq.s32.totalorder %s13, 1
    %p108 = scmp.ne.s32.totalorder %s103, %s105
    %p109 = scmp.eq.s32.totalorder %s13, 0
    %p110 = por %p108, %p109
    %p111 = scmp.ne.s32.totalorder %s103, %s105
    %p112 = scmp.eq.s32.totalorder %s18, 1
    %p113 = por %p111, %p112
    %p114 = scmp.ne.s32.totalorder %s105, %s106
    %p115 = scmp.eq.s32.totalorder %s18, 0
    %p116 = por %p114, %p115
    %p117 = scmp.ne.s32.totalorder %s105, %s106
    %p118 = scmp.eq.s32.totalorder %s19, 1
    %p119 = por %p117, %p118
    %p121 = scmp.ne.s32.totalorder %s106, %s120
    %p122 = scmp.eq.s32.totalorder %s19, 0
    %p123 = por %p121, %p122
    %s125 = sadd.s32 %s124, 1
    %p128 = scmp.eq.s32.totalorder %s13, 1
    %p129 = scmp.ne.s32.totalorder %s124, %s126
    %p130 = scmp.eq.s32.totalorder %s13, 0
    %p131 = por %p129, %p130
    %p132 = scmp.ne.s32.totalorder %s124, %s126
    %p133 = scmp.eq.s32.totalorder %s18, 1
    %p134 = por %p132, %p133
    %p135 = scmp.ne.s32.totalorder %s126, %s127
    %p136 = scmp.eq.s32.totalorder %s18, 0
    %p137 = por %p135, %p136
    %p138 = scmp.ne.s32.totalorder %s126, %s127
    %p139 = scmp.eq.s32.totalorder %s19, 1
    %p140 = por %p138, %p139
    %p142 = scmp.ne.s32.totalorder %s127, %s141
    %p143 = scmp.eq.s32.totalorder %s19, 0
    %p144 = por %p142, %p143
    %s146 = sadd.s32 %s145, 1
    %p149 = scmp.eq.s32.totalorder %s13, 1
    %p150 = scmp.ne.s32.totalorder %s145, %s147
    %p151 = scmp.eq.s32.totalorder %s13, 0
    %p152 = por %p150, %p151
    %p153 = scmp.ne.s32.totalorder %s145, %s147
    %p154 = scmp.eq.s32.totalorder %s18, 1
    %p155 = por %p153, %p154
    %p156 = scmp.ne.s32.totalorder %s147, %s148
    %p157 = scmp.eq.s32.totalorder %s18, 0
    %p158 = por %p156, %p157
    %p159 = scmp.ne.s32.totalorder %s147, %s148
    %p160 = scmp.eq.s32.totalorder %s19, 1
    %p161 = por %p159, %p160
    %p163 = scmp.ne.s32.totalorder %s148, %s162
    %p164 = scmp.eq.s32.totalorder %s19, 0
    %p165 = por %p163, %p164
    %s167 = sadd.s32 %s166, 1
    %p170 = scmp.eq.s32.totalorder %s13, 1
    %p171 = scmp.ne.s32.totalorder %s166, %s168
    %p172 = scmp.eq.s32.totalorder %s13, 0
    %p173 = por %p171, %p172
    %p174 = scmp.ne.s32.totalorder %s166, %s168
    %p175 = scmp.eq.s32.totalorder %s18, 1
    %p176 = por %p174, %p175
    %p177 = scmp.ne.s32.totalorder %s168, %s169
    %p178 = scmp.eq.s32.totalorder %s18, 0
    %p179 = por %p177, %p178
    %p180 = scmp.ne.s32.totalorder %s168, %s169
    %p181 = scmp.eq.s32.totalorder %s19, 1
    %p182 = por %p180, %p181
    %p184 = scmp.ne.s32.totalorder %s169, %s183
    %p185 = scmp.eq.s32.totalorder %s19, 0
    %p186 = por %p184, %p185
    %s187 = ssub.s32 %s20, %s32
    %s188 = ssub.s32 %s21, %s28
    %s189 = sor.u32 %s187, %s188
    %p190 = scmp.eq.s32.totalorder %s189, 0
    %s192 = sadd.s32 %s191, 1
    %s193 = scalar_select %p190, %s191, %s192
    %p196 = pneg %p190
    %p197 = scmp.eq.s32.totalorder %s13, 1
    %p198 = por %p196, %p197
    %p199 = scmp.ne.s32.totalorder %s191, %s194
    %p200 = scmp.eq.s32.totalorder %s13, 0
    %p201 = por %p199, %p200
    %p202 = scmp.ne.s32.totalorder %s191, %s194
    %p203 = scmp.eq.s32.totalorder %s18, 1
    %p204 = por %p202, %p203
    %p205 = scmp.ne.s32.totalorder %s194, %s195
    %p206 = scmp.eq.s32.totalorder %s18, 0
    %p207 = por %p205, %p206
    %p208 = scmp.ne.s32.totalorder %s194, %s195
    %p209 = scmp.eq.s32.totalorder %s19, 1
    %p210 = por %p208, %p209
    %p212 = scmp.ne.s32.totalorder %s195, %s211
    %p213 = scmp.eq.s32.totalorder %s19, 0
    %p214 = por %p212, %p213
    %p215 = scmp.le.s32.totalorder 1, %s13
    %p216 = scmp.lt.s32.totalorder %s13, 3
    %p217 = pnand %p215, %p216
    %p218 = pneg %p217
    // Predicated region
    $region9: #{factorized_reduce_forward.1} parent=5 // pred_check
      _
    $region10: #{factorized_reduce_forward.1} parent=5 // pred_check_branch
      %220 = sbr.rel (%p217) target = $region12
    $region11: #{factorized_reduce_forward.1} parent=5 // pred_region
      %s221 = ssub.s32 %s13, 1
      // Predicated region
      $region13: #{factorized_reduce_forward.1} parent=11 // pred_check
        %p222 = pneg %p74
      $region14: #{factorized_reduce_forward.1} parent=11 // pred_check_branch
        %224 = sbr.rel (%p222) target = $region16
      $region15: #{factorized_reduce_forward.1} parent=11 // pred_region
        _
      $region16: #{factorized_reduce_forward.1} parent=11 // pred_fallthru
        _
      // Predicated region
      $region17: #{factorized_reduce_forward.1} parent=11 // pred_check
        %p225 = pneg %p95
      $region18: #{factorized_reduce_forward.1} parent=11 // pred_check_branch
        %227 = sbr.rel (%p225) target = $region20
      $region19: #{factorized_reduce_forward.1} parent=11 // pred_region
        _
      $region20: #{factorized_reduce_forward.1} parent=11 // pred_fallthru
        _
      // Predicated region
      $region21: #{factorized_reduce_forward.1} parent=11 // pred_check
        %p228 = pneg %p116
      $region22: #{factorized_reduce_forward.1} parent=11 // pred_check_branch
        %230 = sbr.rel (%p228) target = $region24
      $region23: #{factorized_reduce_forward.1} parent=11 // pred_region
        _
      $region24: #{factorized_reduce_forward.1} parent=11 // pred_fallthru
        _
      // Predicated region
      $region25: #{factorized_reduce_forward.1} parent=11 // pred_check
        %p231 = pneg %p137
      $region26: #{factorized_reduce_forward.1} parent=11 // pred_check_branch
        %233 = sbr.rel (%p231) target = $region28
      $region27: #{factorized_reduce_forward.1} parent=11 // pred_region
        _
      $region28: #{factorized_reduce_forward.1} parent=11 // pred_fallthru
        _
      // Predicated region
      $region29: #{factorized_reduce_forward.1} parent=11 // pred_check
        %p234 = pneg %p158
      $region30: #{factorized_reduce_forward.1} parent=11 // pred_check_branch
        %236 = sbr.rel (%p234) target = $region32
      $region31: #{factorized_reduce_forward.1} parent=11 // pred_region
        _
      $region32: #{factorized_reduce_forward.1} parent=11 // pred_fallthru
        _
      // Predicated region
      $region33: #{factorized_reduce_forward.1} parent=11 // pred_check
        %p237 = pneg %p179
      $region34: #{factorized_reduce_forward.1} parent=11 // pred_check_branch
        %239 = sbr.rel (%p237) target = $region36
      $region35: #{factorized_reduce_forward.1} parent=11 // pred_region
        _
      $region36: #{factorized_reduce_forward.1} parent=11 // pred_fallthru
        _
    $region12: #{factorized_reduce_forward.1} parent=5 // pred_fallthru
      _
    %p240 = scmp.lt.s32.totalorder %s13, 2
    // Predicated region
    $region37: #{factorized_reduce_forward.1} parent=5 // pred_check
      %p241 = pneg %p240
    $region38: #{factorized_reduce_forward.1} parent=5 // pred_check_branch
      %243 = sbr.rel (%p241) target = $region40
    $region39: #{factorized_reduce_forward.1} parent=5 // pred_region
      // Predicated region
      $region41: #{factorized_reduce_forward.1} parent=39 // pred_check
        %p244 = pneg %p47
      $region42: #{factorized_reduce_forward.1} parent=39 // pred_check_branch
        %246 = sbr.rel (%p244) target = $region44
      $region43: #{factorized_reduce_forward.1} parent=39 // pred_region
        %s247 = smul.u32 2, %s21
        %p248 = scmp.lt.s32.totalorder %s20, 1
        %s249 = scalar_select %p248, %s20, 1
        %p250 = scmp.lt.s32.totalorder %s247, 1
        %s251 = scalar_select %p250, %s247, 1
        %s252 = smul.addr %s249, 2
        %s253 = sadd.s32 %s251, %s252
        %s254 = smul.addr %s253, 4
        %s255 = scalar_lea.vmem %s0, %s254
        %s256 = smul.u32 2, %s21
      $region44: #{factorized_reduce_forward.1} parent=39 // pred_fallthru
        _
    $region40: #{factorized_reduce_forward.1} parent=5 // pred_fallthru
      _
    %p257 = scmp.le.s32.totalorder 1, %s13
    %p258 = scmp.lt.s32.totalorder %s13, 3
    %p259 = pnand %p257, %p258
    %p260 = pneg %p259
    // Predicated region
    $region45: #{factorized_reduce_forward.1} parent=5 // pred_check
      _
    $region46: #{factorized_reduce_forward.1} parent=5 // pred_check_branch
      %262 = sbr.rel (%p259) target = $region48
    $region47: #{factorized_reduce_forward.1} parent=5 // pred_region
      %s263 = ssub.s32 %s13, 1
      %s264 = smul.u32 2, %s23
      %p265 = scmp.lt.s32.totalorder %s22, 1
      %s266 = scalar_select %p265, %s22, 1
      %p267 = scmp.lt.s32.totalorder %s264, 1
      %s268 = scalar_select %p267, %s264, 1
      %s269 = smul.addr %s266, 2
      %s270 = sadd.s32 %s268, %s269
      %s271 = smul.addr %s270, 4
      %s272 = scalar_lea.vmem %s0, %s271
      %p273 = pneg %p53
      %p274 = pneg %p50
      %p275 = pneg %p74
      %p276 = pneg %p71
      %p277 = pneg %p95
      %p278 = pneg %p92
      %p279 = pneg %p116
      %p280 = pneg %p113
      %p281 = pneg %p137
      %p282 = pneg %p134
      %p283 = pneg %p158
      %p284 = pneg %p155
      %p285 = pneg %p179
      %p286 = pneg %p176
      %p287 = pneg %p207
      %p288 = pneg %p204
      %p289 = scmp.lt.s32.totalorder %s22, 1
      %s290 = scalar_select %p289, %s22, 1
      %p291 = scmp.lt.s32.totalorder %s23, 0
      %s292 = scalar_select %p291, %s23, 0
      %s293 = sadd.s32 %s292, %s290
      %s294 = smul.addr %s293, 8
      %s295 = scalar_lea.vmem %s7, %s294
      %s296 = smul.u32 2, %s23
      %p297 = scmp.lt.s32.totalorder %s22, 1
      %s298 = scalar_select %p297, %s22, 1
      %p299 = scmp.lt.s32.totalorder %s296, 1
      %s300 = scalar_select %p299, %s296, 1
      %s301 = smul.addr %s298, 2
      %s302 = sadd.s32 %s300, %s301
      %s303 = smul.addr %s302, 4
      %s304 = scalar_lea.vmem %s0, %s303
      %s305 = smul.u32 2, %s23
      %p306 = scmp.lt.s32.totalorder %s22, 1
      %s307 = scalar_select %p306, %s22, 1
      %p308 = scmp.lt.s32.totalorder %s23, 0
      %s309 = scalar_select %p308, %s23, 0
      %s310 = sadd.s32 %s309, %s307
      %s311 = smul.addr %s310, 8
      %s312 = scalar_lea.vmem %s7, %s311
      %v313 = vld [vmem:[%s304] sm:$0xff]
      %v314 = vmax.f32 %v313, 0.0
      %v315 = vld [vmem:[%s1] sm:$0xff]
      %v316 = vld [vmem:[%s1 + $0x8] sm:$0xff]
      %v317 = vld [vmem:[%s1 + $0x10] sm:$0xff]
      %v318 = vld [vmem:[%s1 + $0x18] sm:$0xff]
      %v319 = vld [vmem:[%s1 + $0x20] sm:$0xff]
      %v320 = vld [vmem:[%s1 + $0x28] sm:$0xff]
      %v321 = vld [vmem:[%s1 + $0x30] sm:$0xff]
      %v322 = vld [vmem:[%s1 + $0x38] sm:$0xff]
      %v323 = vld [vmem:[%s1 + $0x40] sm:$0xff]
      %v324 = vld [vmem:[%s1 + $0x48] sm:$0xff]
      %v325 = vld [vmem:[%s1 + $0x50] sm:$0xff]
      %v326 = vld [vmem:[%s1 + $0x58] sm:$0xff]
      %v327 = vld [vmem:[%s1 + $0x60] sm:$0xff]
      %v328 = vld [vmem:[%s1 + $0x68] sm:$0xff]
      %v329 = vld [vmem:[%s1 + $0x70] sm:$0xff]
      %v330 = vld [vmem:[%s1 + $0x78] sm:$0xff]
      %v331 = vld [vmem:[%s1 + $0x80] sm:$0xff]
      %v332 = vld [vmem:[%s1 + $0x88] sm:$0xff]
      %v333 = vld [vmem:[%s1 + $0x90] sm:$0xff]
      %v334 = vld [vmem:[%s1 + $0x98] sm:$0xff]
      %v335 = vld [vmem:[%s1 + $0xa0] sm:$0xff]
      %v336 = vld [vmem:[%s1 + $0xa8] sm:$0xff]
      %v337 = vld [vmem:[%s1 + $0xb0] sm:$0xff]
      %v338 = vld [vmem:[%s1 + $0xb8] sm:$0xff]
      %v339 = vld [vmem:[%s1 + $0xc0] sm:$0xff]
      %v340 = vld [vmem:[%s1 + $0xc8] sm:$0xff]
      %v341 = vld [vmem:[%s1 + $0xd0] sm:$0xff]
      %v342 = vld [vmem:[%s1 + $0xd8] sm:$0xff]
      %v343 = vld [vmem:[%s1 + $0xe0] sm:$0xff]
      %v344 = vld [vmem:[%s1 + $0xe8] sm:$0xff]
      %v345 = vld [vmem:[%s1 + $0xf0] sm:$0xff]
      %v346 = vld [vmem:[%s1 + $0xf8] sm:$0xff]
      %v348 = vcombine.high %v314, %v314
      %350 = vmatprep.subr.mxu0 0.0
      %351 = vmatpush1.msra.mxu0 %v315
      %352 = vmatprep.subr.mxu0 0.0
      %353 = vmatpush1.msra.mxu0 %v316
      %354 = vmatprep.subr.mxu0 0.0
      %355 = vmatpush1.msra.mxu0 %v317
      %356 = vmatprep.subr.mxu0 0.0
      %357 = vmatpush1.msra.mxu0 %v318
      %358 = vmatprep.subr.mxu0 0.0
      %359 = vmatpush1.msra.mxu0 %v319
      %360 = vmatprep.subr.mxu0 0.0
      %361 = vmatpush1.msra.mxu0 %v320
      %362 = vmatprep.subr.mxu0 0.0
      %363 = vmatpush1.msra.mxu0 %v321
      %364 = vmatprep.subr.mxu0 0.0
      %365 = vmatpush1.msra.mxu0 %v322
      %366 = vmatprep.subr.mxu0 0.0
      %367 = vmatpush1.msra.mxu0 %v323
      %368 = vmatprep.subr.mxu0 0.0
      %369 = vmatpush1.msra.mxu0 %v324
      %370 = vmatprep.subr.mxu0 0.0
      %371 = vmatpush1.msra.mxu0 %v325
      %372 = vmatprep.subr.mxu0 0.0
      %373 = vmatpush1.msra.mxu0 %v326
      %374 = vmatprep.subr.mxu0 0.0
      %375 = vmatpush1.msra.mxu0 %v327
      %376 = vmatprep.subr.mxu0 0.0
      %377 = vmatpush1.msra.mxu0 %v328
      %378 = vmatprep.subr.mxu0 0.0
      %379 = vmatpush1.msra.mxu0 %v329
      %380 = vmatprep.subr.mxu0 0.0
      %381 = vmatpush1.msra.mxu0 %v330
      %382 = vmatprep.subr.mxu0 0.0
      %383 = vmatpush1.msra.mxu0 %v331
      %384 = vmatprep.subr.mxu0 0.0
      %385 = vmatpush1.msra.mxu0 %v332
      %386 = vmatprep.subr.mxu0 0.0
      %387 = vmatpush1.msra.mxu0 %v333
      %388 = vmatprep.subr.mxu0 0.0
      %389 = vmatpush1.msra.mxu0 %v334
      %390 = vmatprep.subr.mxu0 0.0
      %391 = vmatpush1.msra.mxu0 %v335
      %392 = vmatprep.subr.mxu0 0.0
      %393 = vmatpush1.msra.mxu0 %v336
      %394 = vmatprep.subr.mxu0 0.0
      %395 = vmatpush1.msra.mxu0 %v337
      %396 = vmatprep.subr.mxu0 0.0
      %397 = vmatpush1.msra.mxu0 %v338
      %398 = vmatprep.subr.mxu0 0.0
      %399 = vmatpush1.msra.mxu0 %v339
      %400 = vmatprep.subr.mxu0 0.0
      %401 = vmatpush1.msra.mxu0 %v340
      %402 = vmatprep.subr.mxu0 0.0
      %403 = vmatpush1.msra.mxu0 %v341
      %404 = vmatprep.subr.mxu0 0.0
      %405 = vmatpush1.msra.mxu0 %v342
      %406 = vmatprep.subr.mxu0 0.0
      %407 = vmatpush1.msra.mxu0 %v343
      %408 = vmatprep.subr.mxu0 0.0
      %409 = vmatpush1.msra.mxu0 %v344
      %410 = vmatprep.subr.mxu0 0.0
      %411 = vmatpush1.msra.mxu0 %v345
      %412 = vmatprep.subr.mxu0 0.0
      %413 = vmatpush1.msra.mxu0 %v346
      %414 = vmatprep.mubr.f32.mxu0 %v348
      %415 = vmatmul.mubr.f32.gmra.mrb[0].mxu0 %v314
      %v416 = vpop.f32.mrb[0].mxu0
      %v417 = vadd.f32 0.0, %v416
      %v418 = vpop.f32.mrb[0].mxu0
      %419 = vdwg.mxu0
      %v420 = vld [vmem:[%s2] sm:$0xff]
      %v421 = vld [vmem:[%s2 + $0x8] sm:$0xff]
      %v422 = vld [vmem:[%s2 + $0x10] sm:$0xff]
      %v423 = vld [vmem:[%s2 + $0x18] sm:$0xff]
      %v424 = vld [vmem:[%s2 + $0x20] sm:$0xff]
      %v425 = vld [vmem:[%s2 + $0x28] sm:$0xff]
      %v426 = vld [vmem:[%s2 + $0x30] sm:$0xff]
      %v427 = vld [vmem:[%s2 + $0x38] sm:$0xff]
      %v428 = vld [vmem:[%s2 + $0x40] sm:$0xff]
      %v429 = vld [vmem:[%s2 + $0x48] sm:$0xff]
      %v430 = vld [vmem:[%s2 + $0x50] sm:$0xff]
      %v431 = vld [vmem:[%s2 + $0x58] sm:$0xff]
      %v432 = vld [vmem:[%s2 + $0x60] sm:$0xff]
      %v433 = vld [vmem:[%s2 + $0x68] sm:$0xff]
      %v434 = vld [vmem:[%s2 + $0x70] sm:$0xff]
      %v435 = vld [vmem:[%s2 + $0x78] sm:$0xff]
      %v436 = vld [vmem:[%s2 + $0x80] sm:$0xff]
      %v437 = vld [vmem:[%s2 + $0x88] sm:$0xff]
      %v438 = vld [vmem:[%s2 + $0x90] sm:$0xff]
      %v439 = vld [vmem:[%s2 + $0x98] sm:$0xff]
      %v440 = vld [vmem:[%s2 + $0xa0] sm:$0xff]
      %v441 = vld [vmem:[%s2 + $0xa8] sm:$0xff]
      %v442 = vld [vmem:[%s2 + $0xb0] sm:$0xff]
      %v443 = vld [vmem:[%s2 + $0xb8] sm:$0xff]
      %v444 = vld [vmem:[%s2 + $0xc0] sm:$0xff]
      %v445 = vld [vmem:[%s2 + $0xc8] sm:$0xff]
      %v446 = vld [vmem:[%s2 + $0xd0] sm:$0xff]
      %v447 = vld [vmem:[%s2 + $0xd8] sm:$0xff]
      %v448 = vld [vmem:[%s2 + $0xe0] sm:$0xff]
      %v449 = vld [vmem:[%s2 + $0xe8] sm:$0xff]
      %v450 = vld [vmem:[%s2 + $0xf0] sm:$0xff]
      %v451 = vld [vmem:[%s2 + $0xf8] sm:$0xff]
      %452 = vmatprep.subr.mxu0 0.0
      %453 = vmatpush1.msra.mxu0 %v420
      %454 = vmatprep.subr.mxu0 0.0
      %455 = vmatpush1.msra.mxu0 %v421
      %456 = vmatprep.subr.mxu0 0.0
      %457 = vmatpush1.msra.mxu0 %v422
      %458 = vmatprep.subr.mxu0 0.0
      %459 = vmatpush1.msra.mxu0 %v423
      %460 = vmatprep.subr.mxu0 0.0
      %461 = vmatpush1.msra.mxu0 %v424
      %462 = vmatprep.subr.mxu0 0.0
      %463 = vmatpush1.msra.mxu0 %v425
      %464 = vmatprep.subr.mxu0 0.0
      %465 = vmatpush1.msra.mxu0 %v426
      %466 = vmatprep.subr.mxu0 0.0
      %467 = vmatpush1.msra.mxu0 %v427
      %468 = vmatprep.subr.mxu0 0.0
      %469 = vmatpush1.msra.mxu0 %v428
      %470 = vmatprep.subr.mxu0 0.0
      %471 = vmatpush1.msra.mxu0 %v429
      %472 = vmatprep.subr.mxu0 0.0
      %473 = vmatpush1.msra.mxu0 %v430
      %474 = vmatprep.subr.mxu0 0.0
      %475 = vmatpush1.msra.mxu0 %v431
      %476 = vmatprep.subr.mxu0 0.0
      %477 = vmatpush1.msra.mxu0 %v432
      %478 = vmatprep.subr.mxu0 0.0
      %479 = vmatpush1.msra.mxu0 %v433
      %480 = vmatprep.subr.mxu0 0.0
      %481 = vmatpush1.msra.mxu0 %v434
      %482 = vmatprep.subr.mxu0 0.0
      %483 = vmatpush1.msra.mxu0 %v435
      %484 = vmatprep.subr.mxu0 0.0
      %485 = vmatpush1.msra.mxu0 %v436
      %486 = vmatprep.subr.mxu0 0.0
      %487 = vmatpush1.msra.mxu0 %v437
      %488 = vmatprep.subr.mxu0 0.0
      %489 = vmatpush1.msra.mxu0 %v438
      %490 = vmatprep.subr.mxu0 0.0
      %491 = vmatpush1.msra.mxu0 %v439
      %492 = vmatprep.subr.mxu0 0.0
      %493 = vmatpush1.msra.mxu0 %v440
      %494 = vmatprep.subr.mxu0 0.0
      %495 = vmatpush1.msra.mxu0 %v441
      %496 = vmatprep.subr.mxu0 0.0
      %497 = vmatpush1.msra.mxu0 %v442
      %498 = vmatprep.subr.mxu0 0.0
      %499 = vmatpush1.msra.mxu0 %v443
      %500 = vmatprep.subr.mxu0 0.0
      %501 = vmatpush1.msra.mxu0 %v444
      %502 = vmatprep.subr.mxu0 0.0
      %503 = vmatpush1.msra.mxu0 %v445
      %504 = vmatprep.subr.mxu0 0.0
      %505 = vmatpush1.msra.mxu0 %v446
      %506 = vmatprep.subr.mxu0 0.0
      %507 = vmatpush1.msra.mxu0 %v447
      %508 = vmatprep.subr.mxu0 0.0
      %509 = vmatpush1.msra.mxu0 %v448
      %510 = vmatprep.subr.mxu0 0.0
      %511 = vmatpush1.msra.mxu0 %v449
      %512 = vmatprep.subr.mxu0 0.0
      %513 = vmatpush1.msra.mxu0 %v450
      %514 = vmatprep.subr.mxu0 0.0
      %515 = vmatpush1.msra.mxu0 %v451
      %516 = vmatprep.mubr.f32.mxu0 %v348
      %517 = vmatmul.mubr.f32.gmra.mrb[0].mxu0 %v314
      %v518 = vpop.f32.mrb[0].mxu0
      %v519 = vadd.f32 0.0, %v518
      %v520 = vpop.f32.mrb[0].mxu0
      %521 = vdwg.mxu0
      %v522 = vld [vmem:[%s3] sm:$0xf]
      %v523 = vld [vmem:[%s5] sm:$0xf]
      %525 = vset.pattern.permute.xlu0 0
      %526 = vperm.xlu0 %525, %v523
      %v527 = vpop.permute.xlu0 %526
      %vm529 = vcmask 31744
      %v531 = vsel %vm529, %v522, 0
      %vm533 = vcmask 1043456
      %v535 = vsel %vm533, %v417, 0
      %537 = vmatprep.subr.mxu0 0.0
      %538 = vmatpush1.msra.mxu0 %v535
      %539 = vmatprep.subr.mxu0 0.0
      %540 = vmatpush1.msra.mxu0 0.0
      %541 = vmatprep.subr.mxu0 0.0
      %542 = vmatpush1.msra.mxu0 0.0
      %543 = vmatprep.subr.mxu0 0.0
      %544 = vmatpush1.msra.mxu0 0.0
      %545 = vmatprep.subr.mxu0 0.0
      %546 = vmatpush1.msra.mxu0 0.0
      %547 = vmatprep.subr.mxu0 0.0
      %548 = vmatpush1.msra.mxu0 0.0
      %549 = vmatprep.subr.mxu0 0.0
      %550 = vmatpush1.msra.mxu0 0.0
      %551 = vmatprep.subr.mxu0 0.0
      %552 = vmatpush1.msra.mxu0 0.0
      %553 = vmatprep.subr.mxu0 0.0
      %554 = vmatpush1.msra.mxu0 0.0
      %555 = vmatprep.subr.mxu0 0.0
      %556 = vmatpush1.msra.mxu0 0.0
      %557 = vmatprep.subr.mxu0 0.0
      %558 = vmatpush1.msra.mxu0 0.0
      %559 = vmatprep.subr.mxu0 0.0
      %560 = vmatpush1.msra.mxu0 0.0
      %561 = vmatprep.subr.mxu0 0.0
      %562 = vmatpush1.msra.mxu0 0.0
      %563 = vmatprep.subr.mxu0 0.0
      %564 = vmatpush1.msra.mxu0 0.0
      %565 = vmatprep.subr.mxu0 0.0
      %566 = vmatpush1.msra.mxu0 0.0
      %567 = vmatprep.subr.mxu0 0.0
      %568 = vmatpush1.msra.mxu0 0.0
      %569 = vmatprep.subr.mxu0 0.0
      %570 = vmatpush1.msra.mxu0 0.0
      %571 = vmatprep.subr.mxu0 0.0
      %572 = vmatpush1.msra.mxu0 0.0
      %573 = vmatprep.subr.mxu0 0.0
      %574 = vmatpush1.msra.mxu0 0.0
      %575 = vmatprep.subr.mxu0 0.0
      %576 = vmatpush1.msra.mxu0 0.0
      %577 = vmatprep.subr.mxu0 0.0
      %578 = vmatpush1.msra.mxu0 0.0
      %579 = vmatprep.subr.mxu0 0.0
      %580 = vmatpush1.msra.mxu0 0.0
      %581 = vmatprep.subr.mxu0 0.0
      %582 = vmatpush1.msra.mxu0 0.0
      %583 = vmatprep.subr.mxu0 0.0
      %584 = vmatpush1.msra.mxu0 0.0
      %585 = vmatprep.subr.mxu0 0.0
      %586 = vmatpush1.msra.mxu0 0.0
      %587 = vmatprep.subr.mxu0 0.0
      %588 = vmatpush1.msra.mxu0 0.0
      %589 = vmatprep.subr.mxu0 0.0
      %590 = vmatpush1.msra.mxu0 0.0
      %591 = vmatprep.subr.mxu0 0.0
      %592 = vmatpush1.msra.mxu0 0.0
      %593 = vmatprep.subr.mxu0 0.0
      %594 = vmatpush1.msra.mxu0 0.0
      %595 = vmatprep.subr.mxu0 0.0
      %596 = vmatpush1.msra.mxu0 0.0
      %597 = vmatprep.subr.mxu0 0.0
      %598 = vmatpush1.msra.mxu0 0.0
      %599 = vmatprep.subr.mxu0 0.0
      %600 = vmatpush1.msra.mxu0 0.0
      %601 = vmatprep.mubr.f32.mxu0 0.0
      %602 = vmatmul.mubr.f32.gmra.mrb[0].mxu0 %v531
      %v603 = vpop.f32.mrb[0].mxu0
      %v604 = vadd.f32 %v527, %v603
      %v605 = vpop.f32.mrb[0].mxu0
      %606 = vdwg.mxu0
      %v607 = vld [vmem:[%s4] sm:$0xf]
      %v608 = vld [vmem:[%s6] sm:$0xf]
      %610 = vset.pattern.permute.xlu0 0
      %611 = vperm.xlu0 %610, %v608
      %v612 = vpop.permute.xlu0 %611
      %v615 = vsel %vm529, %v607, 0
      %v618 = vsel %vm533, %v519, 0
      %620 = vmatprep.subr.mxu0 0.0
      %621 = vmatpush1.msra.mxu0 %v618
      %622 = vmatprep.subr.mxu0 0.0
      %623 = vmatpush1.msra.mxu0 0.0
      %624 = vmatprep.subr.mxu0 0.0
      %625 = vmatpush1.msra.mxu0 0.0
      %626 = vmatprep.subr.mxu0 0.0
      %627 = vmatpush1.msra.mxu0 0.0
      %628 = vmatprep.subr.mxu0 0.0
      %629 = vmatpush1.msra.mxu0 0.0
      %630 = vmatprep.subr.mxu0 0.0
      %631 = vmatpush1.msra.mxu0 0.0
      %632 = vmatprep.subr.mxu0 0.0
      %633 = vmatpush1.msra.mxu0 0.0
      %634 = vmatprep.subr.mxu0 0.0
      %635 = vmatpush1.msra.mxu0 0.0
      %636 = vmatprep.subr.mxu0 0.0
      %637 = vmatpush1.msra.mxu0 0.0
      %638 = vmatprep.subr.mxu0 0.0
      %639 = vmatpush1.msra.mxu0 0.0
      %640 = vmatprep.subr.mxu0 0.0
      %641 = vmatpush1.msra.mxu0 0.0
      %642 = vmatprep.subr.mxu0 0.0
      %643 = vmatpush1.msra.mxu0 0.0
      %644 = vmatprep.subr.mxu0 0.0
      %645 = vmatpush1.msra.mxu0 0.0
      %646 = vmatprep.subr.mxu0 0.0
      %647 = vmatpush1.msra.mxu0 0.0
      %648 = vmatprep.subr.mxu0 0.0
      %649 = vmatpush1.msra.mxu0 0.0
      %650 = vmatprep.subr.mxu0 0.0
      %651 = vmatpush1.msra.mxu0 0.0
      %652 = vmatprep.subr.mxu0 0.0
      %653 = vmatpush1.msra.mxu0 0.0
      %654 = vmatprep.subr.mxu0 0.0
      %655 = vmatpush1.msra.mxu0 0.0
      %656 = vmatprep.subr.mxu0 0.0
      %657 = vmatpush1.msra.mxu0 0.0
      %658 = vmatprep.subr.mxu0 0.0
      %659 = vmatpush1.msra.mxu0 0.0
      %660 = vmatprep.subr.mxu0 0.0
      %661 = vmatpush1.msra.mxu0 0.0
      %662 = vmatprep.subr.mxu0 0.0
      %663 = vmatpush1.msra.mxu0 0.0
      %664 = vmatprep.subr.mxu0 0.0
      %665 = vmatpush1.msra.mxu0 0.0
      %666 = vmatprep.subr.mxu0 0.0
      %667 = vmatpush1.msra.mxu0 0.0
      %668 = vmatprep.subr.mxu0 0.0
      %669 = vmatpush1.msra.mxu0 0.0
      %670 = vmatprep.subr.mxu0 0.0
      %671 = vmatpush1.msra.mxu0 0.0
      %672 = vmatprep.subr.mxu0 0.0
      %673 = vmatpush1.msra.mxu0 0.0
      %674 = vmatprep.subr.mxu0 0.0
      %675 = vmatpush1.msra.mxu0 0.0
      %676 = vmatprep.subr.mxu0 0.0
      %677 = vmatpush1.msra.mxu0 0.0
      %678 = vmatprep.subr.mxu0 0.0
      %679 = vmatpush1.msra.mxu0 0.0
      %680 = vmatprep.subr.mxu0 0.0
      %681 = vmatpush1.msra.mxu0 0.0
      %682 = vmatprep.subr.mxu0 0.0
      %683 = vmatpush1.msra.mxu0 0.0
      %684 = vmatprep.mubr.f32.mxu0 0.0
      %685 = vmatmul.mubr.f32.gmra.mrb[0].mxu0 %v615
      %v686 = vpop.f32.mrb[0].mxu0
      %v687 = vadd.f32 %v612, %v686
      %v688 = vpop.f32.mrb[0].mxu0
      %689 = vdwg.mxu0
      %vm690 = vcmask 519168
      %691 = vst.msk [vmem:[%s312] sm:$0xf] %vm690, %v604
      %692 = vst.msk [vmem:[%s312 + $0x4] sm:$0xf] %vm690, %v687
      %p693 = scmp.lt.s32.totalorder %s22, 1
      %s694 = scalar_select %p693, %s22, 1
      %p695 = scmp.lt.s32.totalorder %s23, 0
      %s696 = scalar_select %p695, %s23, 0
      %s697 = sadd.s32 %s696, %s694
      %s698 = smul.addr %s697, 8
      %s699 = scalar_lea.vmem %s7, %s698
      // Predicated region
      $region49: #{factorized_reduce_forward.1} parent=47 // pred_check
        %p700 = pneg %p204
      $region50: #{factorized_reduce_forward.1} parent=47 // pred_check_branch
        %702 = sbr.rel (%p700) target = $region52
      $region51: #{factorized_reduce_forward.1} parent=47 // pred_region
        _
      $region52: #{factorized_reduce_forward.1} parent=47 // pred_fallthru
        _
    $region48: #{factorized_reduce_forward.1} parent=5 // pred_fallthru
      _
    %p703 = scmp.le.s32.totalorder 2, %s13
    // Predicated region
    $region53: #{factorized_reduce_forward.1} parent=5 // pred_check
      %p704 = pneg %p703
    $region54: #{factorized_reduce_forward.1} parent=5 // pred_check_branch
      %706 = sbr.rel (%p704) target = $region56
    $region55: #{factorized_reduce_forward.1} parent=5 // pred_region
      %s707 = ssub.s32 %s13, 2
      // Predicated region
      $region57: #{factorized_reduce_forward.1} parent=55 // pred_check
        %p708 = pneg %p210
      $region58: #{factorized_reduce_forward.1} parent=55 // pred_check_branch
        %710 = sbr.rel (%p708) target = $region60
      $region59: #{factorized_reduce_forward.1} parent=55 // pred_region
        %p711 = scmp.lt.s32.totalorder %s24, 1
        %s712 = scalar_select %p711, %s24, 1
        %p713 = scmp.lt.s32.totalorder %s25, 0
        %s714 = scalar_select %p713, %s25, 0
        %s715 = sadd.s32 %s714, %s712
        %s716 = smul.addr %s715, 8
        %s717 = scalar_lea.vmem %s7, %s716
      $region60: #{factorized_reduce_forward.1} parent=55 // pred_fallthru
        _
    $region56: #{factorized_reduce_forward.1} parent=5 // pred_fallthru
      _
  $region6: #{factorized_reduce_forward.1} parent=0 // loop_footer
    %s17 = sadd.s32 1, %s13
  $region7: #{factorized_reduce_forward.1} parent=0 // loop_footer_branch
    %12 = sbr.rel target = $region3
  $region8: #{factorized_reduce_forward.1} parent=0 // loop_exit
    _

</llo_original>
